<compile_context>
chip_gen: v5e
topology: v5e:2x2
jax: 0.10.0
libtpu: 0.0.40
codegen_flags: <defaults>
</compile_context>

<pallas_src>
import jax
import jax.numpy as jnp
from jax.experimental import pallas as pl
from jax.experimental.pallas import tpu as pltpu


def _round_up(n, m):
    return ((n + m - 1) // m) * m


def _mlp_kernel(line_ref, comp_ref, w1l_ref, w1c_ref, b1_ref,
                w2_ref, b2_ref, w3_ref, b3_ref, o_ref):
    # fc1: fused concat as a split-K matmul (128 + 64), bf16 MXU inputs,
    # f32 accumulation.  Split kept on all chips (perfect fit for v5e's
    # 128-deep MXU; cheap relative to the HBM-bound streams on v6e/v7x).
    line = line_ref[...].astype(jnp.bfloat16)             # (TB, 128)
    comp = comp_ref[...].astype(jnp.bfloat16)             # (TB, 64)
    h1 = jnp.dot(line, w1l_ref[...], preferred_element_type=jnp.float32)
    h1 = h1 + jnp.dot(comp, w1c_ref[...], preferred_element_type=jnp.float32)
    h1 = jnp.maximum(h1 + b1_ref[...], 0.0)               # (TB, 512) f32

    # Dropout(p=0.3) == identity in eval mode.
    # TODO(synk): training-mode dropout (pltpu.prng_seed / prng_random_bits)
    # intentionally omitted.

    # fc2 + ReLU
    h2 = jnp.dot(h1.astype(jnp.bfloat16), w2_ref[...],
                 preferred_element_type=jnp.float32)
    h2 = jnp.maximum(h2 + b2_ref[...], 0.0)                # (TB, 256) f32

    # fc3
    h3 = jnp.dot(h2.astype(jnp.bfloat16), w3_ref[...],
                 preferred_element_type=jnp.float32)
    h3 = h3 + b3_ref[...]                                   # (TB, out_dim) f32

    # F.normalize(p=2, dim=1): x / max(||x||_2, 1e-12).
    # sqrt(max(sq, 1e-24)) == max(||x||, 1e-12), so rsqrt of the clamped sq is
    # exactly 1 / max(||x||, 1e-12).  rsqrt runs on the EUP slot.
    sq = jnp.sum(h3 * h3, axis=-1, keepdims=True)           # (TB, 1)
    inv = jax.lax.rsqrt(jnp.maximum(sq, 1e-24))
    o_ref[...] = (h3 * inv).astype(o_ref.dtype)              # bf16 store


def prepare_params(params, line_feature_dim):
    """One-time weight preprocessing (hoisted out of the per-call path).

    Splits fc1 along K into line/comp slabs and casts weights to bf16
    (MXU inputs); biases stay f32 for the VPU epilogue.
    """
    dl = line_feature_dim
    return {
        "w1l": params["w1"][:dl].astype(jnp.bfloat16),      # (dl, 512)
        "w1c": params["w1"][dl:].astype(jnp.bfloat16),      # (dc, 512)
        "b1": params["b1"].astype(jnp.float32).reshape(1, -1),
        "w2": params["w2"].astype(jnp.bfloat16),
        "b2": params["b2"].astype(jnp.float32).reshape(1, -1),
        "w3": params["w3"].astype(jnp.bfloat16),
        "b3": params["b3"].astype(jnp.float32).reshape(1, -1),
    }


def _pick_tb(B):
    """Batch tile: single 8-row-aligned tile for small B; for large B up to
    1024 rows per step, with at least 2 grid steps so the "parallel" batch
    axis can split across v7x's two TensorCores."""
    if B <= 128:
        return _round_up(max(B, 1), 8)
    return min(1024, _round_up(pl.cdiv(B, 2), 128))


def art_style_embedder(line_features, comp_features, prepared):
    """Pallas-backed forward pass.

    line_features: (B, line_feature_dim) float32
    comp_features: (B, comp_feature_dim) float32
    prepared: output of prepare_params()
    returns: (B, output_dim) bfloat16, L2-normalized rows.
    """
    B, dl = line_features.shape
    dc = comp_features.shape[1]
    h1_dim = prepared["w1l"].shape[1]
    h2_dim = prepared["w2"].shape[1]
    out_dim = prepared["w3"].shape[1]

    TB = _pick_tb(B)
    B_pad = _round_up(B, TB)
    if B_pad != B:
        # Only triggered on ragged batches; padded rows are sliced off below.
        pad = ((0, B_pad - B), (0, 0))
        line_features = jnp.pad(line_features, pad)
        comp_features = jnp.pad(comp_features, pad)
    grid_b = B_pad // TB

    weight_bytes = 2 * (prepared["w1l"].size + prepared["w1c"].size
                        + prepared["w2"].size + prepared["w3"].size)
    bias_bytes = 4 * (prepared["b1"].size + prepared["b2"].size
                      + prepared["b3"].size)

    # VMEM budget: double-buffered f32 input tiles + bf16 output tiles,
    # resident weights/biases, f32 intermediates (h1/h2/h3).  2x safety,
    # clamped to [16 MiB, 48 MiB] (inside v7x's 64 MiB physical VMEM).
    working_set = (
        2 * TB * (dl + dc) * 4
        + 2 * TB * out_dim * 2
        + TB * (h1_dim + h2_dim + out_dim) * 4
        + weight_bytes + bias_bytes)
    vmem_limit = int(min(max(2 * working_set, 16 << 20), 48 << 20))

    flops = 2 * B_pad * ((dl + dc) * h1_dim + h1_dim * h2_dim + h2_dim * out_dim)
    bytes_accessed = (weight_bytes + bias_bytes
                      + B_pad * (dl + dc) * 4        # f32 activations in
                      + B_pad * out_dim * 2)          # bf16 embeddings out

    batch_spec = lambda feat: pl.BlockSpec((TB, feat), lambda i: (i, 0))
    # Constant index_map => DMA'd once, VMEM-resident across grid steps.
    resident = lambda a: pl.BlockSpec(a.shape, lambda i: (0, 0))

    out_padded = pl.pallas_call(
        _mlp_kernel,
        out_shape=jax.ShapeDtypeStruct((B_pad, out_dim), jnp.bfloat16),
        grid_spec=pltpu.PrefetchScalarGridSpec(
            num_scalar_prefetch=0,
            grid=(grid_b,),
            in_specs=[
                batch_spec(dl),          # line features
                batch_spec(dc),          # comp features
                resident(prepared["w1l"]), resident(prepared["w1c"]),
                resident(prepared["b1"]),
                resident(prepared["w2"]), resident(prepared["b2"]),
                resident(prepared["w3"]), resident(prepared["b3"]),
            ],
            out_specs=pl.BlockSpec((TB, out_dim), lambda i: (i, 0)),
        ),
        compiler_params=pltpu.CompilerParams(
            dimension_semantics=("parallel",),
            vmem_limit_bytes=vmem_limit,
        ),
        cost_estimate=pl.CostEstimate(
            flops=flops, transcendentals=B_pad, bytes_accessed=bytes_accessed),
    )(line_features, comp_features,
      prepared["w1l"], prepared["w1c"], prepared["b1"],
      prepared["w2"], prepared["b2"],
      prepared["w3"], prepared["b3"])

    return out_padded[:B]


def init_params(key, line_feature_dim=128, comp_feature_dim=64, output_dim=256):
    """Deterministic parameter init mimicking nn.Linear (uniform +-1/sqrt(fan_in)).

    Weights are stored as (in_features, out_features) = PyTorch weight.T
    """
    concat_dim = line_feature_dim + comp_feature_dim
    dims = [(concat_dim, 512), (512, 256), (256, output_dim)]
    params = {}
    for i, (fan_in, fan_out) in enumerate(dims, start=1):
        key, kw, kb = jax.random.split(key, 3)
        bound = 1.0 / jnp.sqrt(fan_in)
        params[f"w{i}"] = jax.random.uniform(
            kw, (fan_in, fan_out), jnp.float32, -bound, bound)
        params[f"b{i}"] = jax.random.uniform(
            kb, (1, fan_out), jnp.float32, -bound, bound)
    return params


def _reference(line_features, comp_features, params):
    """Plain-JAX f32 reference for correctness check."""
    x = jnp.concatenate([line_features, comp_features], axis=1)
    x = jnp.maximum(x @ params["w1"] + params["b1"], 0.0)
    x = jnp.maximum(x @ params["w2"] + params["b2"], 0.0)
    x = x @ params["w3"] + params["b3"]
    n = jnp.sqrt(jnp.sum(x * x, axis=1, keepdims=True))
    return x / jnp.maximum(n, 1e-12)


if __name__ == "__main__":
    key = jax.random.PRNGKey(0)
    k_params, k_line, k_comp = jax.random.split(key, 3)

    batch = 2
    line_feature_dim, comp_feature_dim, output_dim = 128, 64, 256

    params = init_params(k_params, line_feature_dim, comp_feature_dim, output_dim)
    prepared = prepare_params(params, line_feature_dim)

    line_features = jax.random.normal(k_line, (batch, line_feature_dim), jnp.float32)
    comp_features = jax.random.normal(k_comp, (batch, comp_feature_dim), jnp.float32)

    out = art_style_embedder(line_features, comp_features, prepared)
    out = jax.block_until_ready(out)

    ref = _reference(line_features, comp_features, params)
    assert out.shape == (batch, output_dim)
    assert out.dtype == jnp.bfloat16
    # bf16 matmul inputs + bf16 output store => looser tolerance than pure f32.
    err = jnp.max(jnp.abs(out.astype(jnp.float32) - ref))
    assert jnp.allclose(out.astype(jnp.float32), ref, atol=2e-2, rtol=2e-2), float(err)

    print("KERNEL_OK")
</pallas_src>

<mosaic_0001>
module attributes {stable_mosaic.version = 11 : i64} {
  func.func @_mlp_kernel(%arg0: i32, %arg1: memref<8x128xf32, #tpu.memory_space<vmem>>, %arg2: memref<8x64xf32, #tpu.memory_space<vmem>>, %arg3: memref<128x512xbf16, #tpu.memory_space<vmem>>, %arg4: memref<64x512xbf16, #tpu.memory_space<vmem>>, %arg5: memref<1x512xf32, #tpu.memory_space<vmem>>, %arg6: memref<512x256xbf16, #tpu.memory_space<vmem>>, %arg7: memref<1x256xf32, #tpu.memory_space<vmem>>, %arg8: memref<256x256xbf16, #tpu.memory_space<vmem>>, %arg9: memref<1x256xf32, #tpu.memory_space<vmem>>, %arg10: memref<8x256xbf16, #tpu.memory_space<vmem>>) attributes {dimension_semantics = [#tpu.dimension_semantics<parallel>], iteration_bounds = array<i64: 1>, scalar_prefetch = 0 : i64, scratch_operands = 0 : i64, tpu.core_type = #tpu.core_type<tc>, window_params = [{transform_indices = @transform_0, window_bounds = array<i64: 8, 128>}, {transform_indices = @transform_1, window_bounds = array<i64: 8, 64>}, {pipeline_mode = #tpu.pipeline_mode<synchronous>, transform_indices = @transform_2, window_bounds = array<i64: 128, 512>}, {pipeline_mode = #tpu.pipeline_mode<synchronous>, transform_indices = @transform_3, window_bounds = array<i64: 64, 512>}, {pipeline_mode = #tpu.pipeline_mode<synchronous>, transform_indices = @transform_4, window_bounds = array<i64: 1, 512>}, {pipeline_mode = #tpu.pipeline_mode<synchronous>, transform_indices = @transform_5, window_bounds = array<i64: 512, 256>}, {pipeline_mode = #tpu.pipeline_mode<synchronous>, transform_indices = @transform_6, window_bounds = array<i64: 1, 256>}, {pipeline_mode = #tpu.pipeline_mode<synchronous>, transform_indices = @transform_7, window_bounds = array<i64: 256, 256>}, {pipeline_mode = #tpu.pipeline_mode<synchronous>, transform_indices = @transform_8, window_bounds = array<i64: 1, 256>}, {transform_indices = @transform_9, window_bounds = array<i64: 8, 256>}]} {
    %c0 = arith.constant 0 : index
    %c0_0 = arith.constant 0 : index
    %0 = vector.load %arg1[%c0, %c0_0] : memref<8x128xf32, #tpu.memory_space<vmem>>, vector<8x128xf32>
    %1 = arith.truncf %0 : vector<8x128xf32> to vector<8x128xbf16>
    %c0_1 = arith.constant 0 : index
    %c0_2 = arith.constant 0 : index
    %2 = vector.load %arg2[%c0_1, %c0_2] : memref<8x64xf32, #tpu.memory_space<vmem>>, vector<8x64xf32>
    %3 = arith.truncf %2 : vector<8x64xf32> to vector<8x64xbf16>
    %c0_3 = arith.constant 0 : index
    %c0_4 = arith.constant 0 : index
    %4 = vector.load %arg3[%c0_3, %c0_4] : memref<128x512xbf16, #tpu.memory_space<vmem>>, vector<128x512xbf16>
    %cst = arith.constant dense<0.000000e+00> : vector<8x512xf32>
    %5 = tpu.matmul %1, %4, %cst {dimension_numbers = #tpu.dot_dimension_numbers<[1], [0], [0], [1], [0, 0, 1, 1], [], []>} : vector<8x128xbf16>, vector<128x512xbf16>, vector<8x512xf32> -> vector<8x512xf32>
    %c0_5 = arith.constant 0 : index
    %c0_6 = arith.constant 0 : index
    %6 = vector.load %arg4[%c0_5, %c0_6] : memref<64x512xbf16, #tpu.memory_space<vmem>>, vector<64x512xbf16>
    %cst_7 = arith.constant dense<0.000000e+00> : vector<8x512xf32>
    %7 = tpu.matmul %3, %6, %cst_7 {dimension_numbers = #tpu.dot_dimension_numbers<[1], [0], [0], [1], [0, 0, 1, 1], [], []>} : vector<8x64xbf16>, vector<64x512xbf16>, vector<8x512xf32> -> vector<8x512xf32>
    %8 = arith.addf %5, %7 : vector<8x512xf32>
    %c0_8 = arith.constant 0 : index
    %c0_9 = arith.constant 0 : index
    %9 = vector.load %arg5[%c0_8, %c0_9] : memref<1x512xf32, #tpu.memory_space<vmem>>, vector<1x512xf32>
    %10 = vector.broadcast %9 : vector<1x512xf32> to vector<8x512xf32>
    %11 = arith.addf %8, %10 : vector<8x512xf32>
    %cst_10 = arith.constant 0.000000e+00 : f32
    %12 = vector.broadcast %cst_10 : f32 to vector<8x512xf32>
    %13 = arith.maximumf %11, %12 : vector<8x512xf32>
    %14 = arith.truncf %13 : vector<8x512xf32> to vector<8x512xbf16>
    %c0_11 = arith.constant 0 : index
    %c0_12 = arith.constant 0 : index
    %15 = vector.load %arg6[%c0_11, %c0_12] : memref<512x256xbf16, #tpu.memory_space<vmem>>, vector<512x256xbf16>
    %cst_13 = arith.constant dense<0.000000e+00> : vector<8x256xf32>
    %16 = tpu.matmul %14, %15, %cst_13 {dimension_numbers = #tpu.dot_dimension_numbers<[1], [0], [0], [1], [0, 0, 1, 1], [], []>} : vector<8x512xbf16>, vector<512x256xbf16>, vector<8x256xf32> -> vector<8x256xf32>
    %c0_14 = arith.constant 0 : index
    %c0_15 = arith.constant 0 : index
    %17 = vector.load %arg7[%c0_14, %c0_15] : memref<1x256xf32, #tpu.memory_space<vmem>>, vector<1x256xf32>
    %18 = vector.broadcast %17 : vector<1x256xf32> to vector<8x256xf32>
    %19 = arith.addf %16, %18 : vector<8x256xf32>
    %cst_16 = arith.constant 0.000000e+00 : f32
    %20 = vector.broadcast %cst_16 : f32 to vector<8x256xf32>
    %21 = arith.maximumf %19, %20 : vector<8x256xf32>
    %22 = arith.truncf %21 : vector<8x256xf32> to vector<8x256xbf16>
    %c0_17 = arith.constant 0 : index
    %c0_18 = arith.constant 0 : index
    %23 = vector.load %arg8[%c0_17, %c0_18] : memref<256x256xbf16, #tpu.memory_space<vmem>>, vector<256x256xbf16>
    %cst_19 = arith.constant dense<0.000000e+00> : vector<8x256xf32>
    %24 = tpu.matmul %22, %23, %cst_19 {dimension_numbers = #tpu.dot_dimension_numbers<[1], [0], [0], [1], [0, 0, 1, 1], [], []>} : vector<8x256xbf16>, vector<256x256xbf16>, vector<8x256xf32> -> vector<8x256xf32>
    %c0_20 = arith.constant 0 : index
    %c0_21 = arith.constant 0 : index
    %25 = vector.load %arg9[%c0_20, %c0_21] : memref<1x256xf32, #tpu.memory_space<vmem>>, vector<1x256xf32>
    %26 = vector.broadcast %25 : vector<1x256xf32> to vector<8x256xf32>
    %27 = arith.addf %24, %26 : vector<8x256xf32>
    %28 = arith.mulf %27, %27 : vector<8x256xf32>
    %cst_22 = arith.constant dense<0.000000e+00> : vector<8xf32>
    %29 = vector.multi_reduction <add>, %28, %cst_22 [1] : vector<8x256xf32> to vector<8xf32>
    %30 = vector.shape_cast %29 : vector<8xf32> to vector<8x1xf32>
    %cst_23 = arith.constant 1.000000e-24 : f32
    %31 = vector.broadcast %cst_23 : f32 to vector<8x1xf32>
    %32 = arith.maximumf %30, %31 : vector<8x1xf32>
    %33 = math.rsqrt %32 : vector<8x1xf32>
    %34 = vector.broadcast %33 : vector<8x1xf32> to vector<8x256xf32>
    %35 = arith.mulf %27, %34 : vector<8x256xf32>
    %36 = arith.truncf %35 : vector<8x256xf32> to vector<8x256xbf16>
    %c0_24 = arith.constant 0 : index
    %c0_25 = arith.constant 0 : index
    %37 = vector.load %arg10[%c0_24, %c0_25] : memref<8x256xbf16, #tpu.memory_space<vmem>>, vector<8x256xbf16>
    tpu.vector_store %arg10[%c0_24, %c0_25], %36 {strides = array<i32>} : memref<8x256xbf16, #tpu.memory_space<vmem>>, vector<8x256xbf16>,
    return
  }
  func.func @transform_0(%arg0: i32) -> (i32, i32) {
    %c0_i32 = arith.constant 0 : i32
    %c0_i32_0 = arith.constant 0 : i32
    return %arg0, %c0_i32 : i32, i32
  }
  func.func @transform_1(%arg0: i32) -> (i32, i32) {
    %c0_i32 = arith.constant 0 : i32
    %c0_i32_0 = arith.constant 0 : i32
    return %arg0, %c0_i32 : i32, i32
  }
  func.func @transform_2(%arg0: i32) -> (i32, i32) {
    %c0_i32 = arith.constant 0 : i32
    %c0_i32_0 = arith.constant 0 : i32
    %c0_i32_1 = arith.constant 0 : i32
    return %c0_i32, %c0_i32_0 : i32, i32
  }
  func.func @transform_3(%arg0: i32) -> (i32, i32) {
    %c0_i32 = arith.constant 0 : i32
    %c0_i32_0 = arith.constant 0 : i32
    %c0_i32_1 = arith.constant 0 : i32
    return %c0_i32, %c0_i32_0 : i32, i32
  }
  func.func @transform_4(%arg0: i32) -> (i32, i32) {
    %c0_i32 = arith.constant 0 : i32
    %c0_i32_0 = arith.constant 0 : i32
    %c0_i32_1 = arith.constant 0 : i32
    return %c0_i32, %c0_i32_0 : i32, i32
  }
  func.func @transform_5(%arg0: i32) -> (i32, i32) {
    %c0_i32 = arith.constant 0 : i32
    %c0_i32_0 = arith.constant 0 : i32
    %c0_i32_1 = arith.constant 0 : i32
    return %c0_i32, %c0_i32_0 : i32, i32
  }
  func.func @transform_6(%arg0: i32) -> (i32, i32) {
    %c0_i32 = arith.constant 0 : i32
    %c0_i32_0 = arith.constant 0 : i32
    %c0_i32_1 = arith.constant 0 : i32
    return %c0_i32, %c0_i32_0 : i32, i32
  }
  func.func @transform_7(%arg0: i32) -> (i32, i32) {
    %c0_i32 = arith.constant 0 : i32
    %c0_i32_0 = arith.constant 0 : i32
    %c0_i32_1 = arith.constant 0 : i32
    return %c0_i32, %c0_i32_0 : i32, i32
  }
  func.func @transform_8(%arg0: i32) -> (i32, i32) {
    %c0_i32 = arith.constant 0 : i32
    %c0_i32_0 = arith.constant 0 : i32
    %c0_i32_1 = arith.constant 0 : i32
    return %c0_i32, %c0_i32_0 : i32, i32
  }
  func.func @transform_9(%arg0: i32) -> (i32, i32) {
    %c0_i32 = arith.constant 0 : i32
    %c0_i32_0 = arith.constant 0 : i32
    return %arg0, %c0_i32 : i32, i32
  }
}

</mosaic_0001>

<llo_original>
// kernel: tpu_custom_call.1
$region0: #{tpu_custom_call.1}
  #allocation0 [shape = 'u32[]', space=smem, size = 0x4, offset = 0x4, fixed_abs, tag = 'smem constant byte address 0x4 - core index']
  #allocation1 [shape = 'u32[72,128]{1,0:T(1,128)}', space=vmem, size = 0x9000, scoped, tag = 'internal scratch']
  %s0 = inlined_call_operand.hbm [shape: f32[8,128], index: 0, kind: input, shape index: {}]
  %s1 = inlined_call_operand.hbm [shape: f32[8,64], index: 1, kind: input, shape index: {}]
  %s2 = inlined_call_operand.hbm [shape: bf16[128,512], index: 2, kind: input, shape index: {}]
  %s3 = inlined_call_operand.hbm [shape: bf16[64,512], index: 3, kind: input, shape index: {}]
  %s4 = inlined_call_operand.hbm [shape: f32[1,512], index: 4, kind: input, shape index: {}]
  %s5 = inlined_call_operand.hbm [shape: bf16[512,256], index: 5, kind: input, shape index: {}]
  %s6 = inlined_call_operand.vmem [shape: f32[1,256], index: 6, kind: input, shape index: {}]
  %s7 = inlined_call_operand.hbm [shape: bf16[256,256], index: 7, kind: input, shape index: {}]
  %s8 = inlined_call_operand.vmem [shape: f32[1,256], index: 8, kind: input, shape index: {}]
  %s9 = inlined_call_operand.hbm [shape: bf16[8,256], index: 9, kind: output, shape index: {}]
  %s10 = sld [smem:[#allocation0]]
  $region74: #{tpu_custom_call.1} parent=0
    _
  %s12 = ssub.s32 1, %s10
  %s13 = scalar_select 0, %s12, %s10
  $region1: #{tpu_custom_call.1} parent=0
    #allocation2 [shape = 'u8[4096]{0}', space=vmem, size = 0x1000, scoped, tag = 'input window, operand 0, single buffered']
    #allocation3 [shape = 's32[1]{0}', space=sflag, size = 0x4, scoped, tag = 'scoped memory for tpu_custom_call.1']
    #allocation4 [shape = 's32[1]{0}', space=sflag, size = 0x4, scoped, tag = 'scoped memory for tpu_custom_call.1']
    #allocation5 [shape = 'u8[4096]{0}', space=vmem, size = 0x1000, scoped, tag = 'input window, operand 1, single buffered']
    #allocation6 [shape = 's32[1]{0}', space=sflag, size = 0x4, scoped, tag = 'scoped memory for tpu_custom_call.1']
    #allocation7 [shape = 'u8[131072]{0}', space=vmem, size = 0x20000, scoped, tag = 'input window, operand 2, single buffered']
    #allocation8 [shape = 'u8[65536]{0}', space=vmem, size = 0x10000, scoped, tag = 'input window, operand 3, single buffered']
    #allocation9 [shape = 's32[1]{0}', space=sflag, size = 0x4, scoped, tag = 'scoped memory for tpu_custom_call.1']
    #allocation10 [shape = 'u8[2048]{0}', space=vmem, size = 0x800, scoped, tag = 'input window, operand 4, single buffered']
    #allocation11 [shape = 'u8[262144]{0}', space=vmem, size = 0x40000, scoped, tag = 'input window, operand 5, single buffered']
    #allocation12 [shape = 's32[1]{0}', space=sflag, size = 0x4, scoped, tag = 'scoped memory for tpu_custom_call.1']
    #allocation13 [shape = 'u8[131072]{0}', space=vmem, size = 0x20000, scoped, tag = 'input window, operand 7, single buffered']
    #allocation14 [shape = 'u8[4096]{0}', space=vmem, size = 0x1000, scoped, tag = 'output window, operand 0, single buffered']
    %14 = vsyncpa [#allocation3], 0
    %15 = vsyncpa [#allocation6], 0
    %16 = vsyncpa [#allocation9], 0
    %17 = vsyncpa [#allocation12], 0
    %18 = vsyncpa [#allocation4], 0
    // Predicated region
    $region2: #{tpu_custom_call.1} parent=1 // pred_check
      _
    $region3: #{tpu_custom_call.1} parent=1 // pred_check_branch
      %20 = sbr.rel (0) target = $region5
    $region4: #{tpu_custom_call.1} parent=1 // pred_region
      %22 = vsyncadd [#allocation3], 0
      %s24 = sshll.u32 %s0, 4
      %s25 = int_to_ptr.hbm [resolvable:$true] %s24
      %s26 = sshll.u32 [#allocation2], 4
      %s27 = int_to_ptr.vmem [resolvable:$true] %s26
      %29 = dma.hbm_to_vmem [thread:$0]  %s25, 128, %s27, [#allocation3]
    $region5: #{tpu_custom_call.1} parent=1 // pred_fallthru
      _
    // Predicated region
    $region6: #{tpu_custom_call.1} parent=1 // pred_check
      _
    $region7: #{tpu_custom_call.1} parent=1 // pred_check_branch
      %31 = sbr.rel (0) target = $region9
    $region8: #{tpu_custom_call.1} parent=1 // pred_region
      %33 = vsyncadd [#allocation6], 0
      %s35 = sshll.u32 %s1, 4
      %s36 = int_to_ptr.hbm [resolvable:$true] %s35
      %s37 = sshll.u32 [#allocation5], 4
      %s38 = int_to_ptr.vmem [resolvable:$true] %s37
      %40 = dma.hbm_to_vmem [thread:$0]  %s36, 128, %s38, [#allocation6]
    $region9: #{tpu_custom_call.1} parent=1 // pred_fallthru
      _
    // Predicated region
    $region10: #{tpu_custom_call.1} parent=1 // pred_check
      _
    $region11: #{tpu_custom_call.1} parent=1 // pred_check_branch
      %42 = sbr.rel (0) target = $region13
    $region12: #{tpu_custom_call.1} parent=1 // pred_region
      %44 = vsyncadd [#allocation6], 0
      %s45 = sshll.u32 %s2, 4
      %s46 = int_to_ptr.hbm [resolvable:$true] %s45
      %s47 = sshll.u32 [#allocation7], 4
      %s48 = int_to_ptr.vmem [resolvable:$true] %s47
      %53 = dma.hbm_to_vmem [thread:$0]  %s46, 4096, %s48, [#allocation6], 256, 256, 16
    $region13: #{tpu_custom_call.1} parent=1 // pred_fallthru
      _
    // Predicated region
    $region14: #{tpu_custom_call.1} parent=1 // pred_check
      _
    $region15: #{tpu_custom_call.1} parent=1 // pred_check_branch
      %55 = sbr.rel (0) target = $region17
    $region16: #{tpu_custom_call.1} parent=1 // pred_region
      %57 = vsyncadd [#allocation9], 0
      %s58 = sshll.u32 %s3, 4
      %s59 = int_to_ptr.hbm [resolvable:$true] %s58
      %s60 = sshll.u32 [#allocation8], 4
      %s61 = int_to_ptr.vmem [resolvable:$true] %s60
      %66 = dma.hbm_to_vmem [thread:$0]  %s59, 2048, %s61, [#allocation9], 256, 256, 16
    $region17: #{tpu_custom_call.1} parent=1 // pred_fallthru
      _
    // Predicated region
    $region18: #{tpu_custom_call.1} parent=1 // pred_check
      _
    $region19: #{tpu_custom_call.1} parent=1 // pred_check_branch
      %68 = sbr.rel (0) target = $region21
    $region20: #{tpu_custom_call.1} parent=1 // pred_region
      %70 = vsyncadd [#allocation9], 0
      %s72 = sshll.u32 %s4, 4
      %s73 = int_to_ptr.hbm [resolvable:$true] %s72
      %s74 = sshll.u32 [#allocation10], 4
      %s75 = int_to_ptr.vmem [resolvable:$true] %s74
      %77 = dma.hbm_to_vmem [thread:$0]  %s73, 64, %s75, [#allocation9]
    $region21: #{tpu_custom_call.1} parent=1 // pred_fallthru
      _
    // Predicated region
    $region22: #{tpu_custom_call.1} parent=1 // pred_check
      _
    $region23: #{tpu_custom_call.1} parent=1 // pred_check_branch
      %79 = sbr.rel (0) target = $region25
    $region24: #{tpu_custom_call.1} parent=1 // pred_region
      %81 = vsyncadd [#allocation12], 0
      %s82 = sshll.u32 %s5, 4
      %s83 = int_to_ptr.hbm [resolvable:$true] %s82
      %s84 = sshll.u32 [#allocation11], 4
      %s85 = int_to_ptr.vmem [resolvable:$true] %s84
      %90 = dma.hbm_to_vmem [thread:$0]  %s83, 8192, %s85, [#allocation12], 128, 128, 8
    $region25: #{tpu_custom_call.1} parent=1 // pred_fallthru
      _
    // Predicated region
    $region26: #{tpu_custom_call.1} parent=1 // pred_check
      _
    $region27: #{tpu_custom_call.1} parent=1 // pred_check_branch
      %92 = sbr.rel (0) target = $region29
    $region28: #{tpu_custom_call.1} parent=1 // pred_region
      _
    $region29: #{tpu_custom_call.1} parent=1 // pred_fallthru
      _
    // Predicated region
    $region30: #{tpu_custom_call.1} parent=1 // pred_check
      _
    $region31: #{tpu_custom_call.1} parent=1 // pred_check_branch
      %94 = sbr.rel (0) target = $region33
    $region32: #{tpu_custom_call.1} parent=1 // pred_region
      %96 = vsyncadd [#allocation12], 0
      %s97 = sshll.u32 %s7, 4
      %s98 = int_to_ptr.hbm [resolvable:$true] %s97
      %s99 = sshll.u32 [#allocation13], 4
      %s100 = int_to_ptr.vmem [resolvable:$true] %s99
      %105 = dma.hbm_to_vmem [thread:$0]  %s98, 4096, %s100, [#allocation12], 128, 128, 8
    $region33: #{tpu_custom_call.1} parent=1 // pred_fallthru
      _
    // Predicated region
    $region34: #{tpu_custom_call.1} parent=1 // pred_check
      _
    $region35: #{tpu_custom_call.1} parent=1 // pred_check_branch
      %107 = sbr.rel (0) target = $region37
    $region36: #{tpu_custom_call.1} parent=1 // pred_region
      _
    $region37: #{tpu_custom_call.1} parent=1 // pred_fallthru
      _
    // Predicated region
    $region38: #{tpu_custom_call.1} parent=1 // pred_check
      _
    $region39: #{tpu_custom_call.1} parent=1 // pred_check_branch
      %109 = sbr.rel (0) target = $region41
    $region40: #{tpu_custom_call.1} parent=1 // pred_region
      %111 = dma.done [#allocation3], 128
    $region41: #{tpu_custom_call.1} parent=1 // pred_fallthru
      _
    // Predicated region
    $region42: #{tpu_custom_call.1} parent=1 // pred_check
      _
    $region43: #{tpu_custom_call.1} parent=1 // pred_check_branch
      %113 = sbr.rel (0) target = $region45
    $region44: #{tpu_custom_call.1} parent=1 // pred_region
      %115 = dma.done [#allocation6], 128
    $region45: #{tpu_custom_call.1} parent=1 // pred_fallthru
      _
    // Predicated region
    $region46: #{tpu_custom_call.1} parent=1 // pred_check
      _
    $region47: #{tpu_custom_call.1} parent=1 // pred_check_branch
      %117 = sbr.rel (0) target = $region49
    $region48: #{tpu_custom_call.1} parent=1 // pred_region
      %119 = dma.done [#allocation6], 4096
    $region49: #{tpu_custom_call.1} parent=1 // pred_fallthru
      _
    // Predicated region
    $region50: #{tpu_custom_call.1} parent=1 // pred_check
      _
    $region51: #{tpu_custom_call.1} parent=1 // pred_check_branch
      %121 = sbr.rel (0) target = $region53
    $region52: #{tpu_custom_call.1} parent=1 // pred_region
      %123 = dma.done [#allocation9], 2048
    $region53: #{tpu_custom_call.1} parent=1 // pred_fallthru
      _
    // Predicated region
    $region54: #{tpu_custom_call.1} parent=1 // pred_check
      _
    $region55: #{tpu_custom_call.1} parent=1 // pred_check_branch
      %125 = sbr.rel (0) target = $region57
    $region56: #{tpu_custom_call.1} parent=1 // pred_region
      %127 = dma.done [#allocation9], 64
    $region57: #{tpu_custom_call.1} parent=1 // pred_fallthru
      _
    // Predicated region
    $region58: #{tpu_custom_call.1} parent=1 // pred_check
      _
    $region59: #{tpu_custom_call.1} parent=1 // pred_check_branch
      %129 = sbr.rel (0) target = $region61
    $region60: #{tpu_custom_call.1} parent=1 // pred_region
      %131 = dma.done [#allocation12], 8192
    $region61: #{tpu_custom_call.1} parent=1 // pred_fallthru
      _
    // Predicated region
    $region62: #{tpu_custom_call.1} parent=1 // pred_check
      _
    $region63: #{tpu_custom_call.1} parent=1 // pred_check_branch
      %133 = sbr.rel (0) target = $region65
    $region64: #{tpu_custom_call.1} parent=1 // pred_region
      %135 = dma.done [#allocation12], 4096
    $region65: #{tpu_custom_call.1} parent=1 // pred_fallthru
      _
    %v137 = vld [vmem:[#allocation2] sm:$0xff]
    %v138 = vpack.c.bf16 %v137, %v137
    %v139 = vld [vmem:[#allocation5] sm:$0xff]
    %v140 = vpack.c.bf16 %v139, %v139
    %v141 = vld [vmem:[#allocation7] sm:$0xff]
    %v142 = vld [vmem:[#allocation7 + $0x8] sm:$0xff]
    %v143 = vld [vmem:[#allocation7 + $0x10] sm:$0xff]
    %v144 = vld [vmem:[#allocation7 + $0x18] sm:$0xff]
    %v145 = vld [vmem:[#allocation7 + $0x20] sm:$0xff]
    %v146 = vld [vmem:[#allocation7 + $0x28] sm:$0xff]
    %v147 = vld [vmem:[#allocation7 + $0x30] sm:$0xff]
    %v148 = vld [vmem:[#allocation7 + $0x38] sm:$0xff]
    %v149 = vld [vmem:[#allocation7 + $0x40] sm:$0xff]
    %v150 = vld [vmem:[#allocation7 + $0x48] sm:$0xff]
    %v151 = vld [vmem:[#allocation7 + $0x50] sm:$0xff]
    %v152 = vld [vmem:[#allocation7 + $0x58] sm:$0xff]
    %v153 = vld [vmem:[#allocation7 + $0x60] sm:$0xff]
    %v154 = vld [vmem:[#allocation7 + $0x68] sm:$0xff]
    %v155 = vld [vmem:[#allocation7 + $0x70] sm:$0xff]
    %v156 = vld [vmem:[#allocation7 + $0x78] sm:$0xff]
    %v157 = vld [vmem:[#allocation7 + $0x80] sm:$0xff]
    %v158 = vld [vmem:[#allocation7 + $0x88] sm:$0xff]
    %v159 = vld [vmem:[#allocation7 + $0x90] sm:$0xff]
    %v160 = vld [vmem:[#allocation7 + $0x98] sm:$0xff]
    %v161 = vld [vmem:[#allocation7 + $0xa0] sm:$0xff]
    %v162 = vld [vmem:[#allocation7 + $0xa8] sm:$0xff]
    %v163 = vld [vmem:[#allocation7 + $0xb0] sm:$0xff]
    %v164 = vld [vmem:[#allocation7 + $0xb8] sm:$0xff]
    %v165 = vld [vmem:[#allocation7 + $0xc0] sm:$0xff]
    %v166 = vld [vmem:[#allocation7 + $0xc8] sm:$0xff]
    %v167 = vld [vmem:[#allocation7 + $0xd0] sm:$0xff]
    %v168 = vld [vmem:[#allocation7 + $0xd8] sm:$0xff]
    %v169 = vld [vmem:[#allocation7 + $0xe0] sm:$0xff]
    %v170 = vld [vmem:[#allocation7 + $0xe8] sm:$0xff]
    %v171 = vld [vmem:[#allocation7 + $0xf0] sm:$0xff]
    %v172 = vld [vmem:[#allocation7 + $0xf8] sm:$0xff]
    %v173 = vld [vmem:[#allocation8] sm:$0xff]
    %v174 = vld [vmem:[#allocation8 + $0x8] sm:$0xff]
    %v175 = vld [vmem:[#allocation8 + $0x10] sm:$0xff]
    %v176 = vld [vmem:[#allocation8 + $0x18] sm:$0xff]
    %v177 = vld [vmem:[#allocation8 + $0x20] sm:$0xff]
    %v178 = vld [vmem:[#allocation8 + $0x28] sm:$0xff]
    %v179 = vld [vmem:[#allocation8 + $0x30] sm:$0xff]
    %v180 = vld [vmem:[#allocation8 + $0x38] sm:$0xff]
    %v181 = vld [vmem:[#allocation8 + $0x40] sm:$0xff]
    %v182 = vld [vmem:[#allocation8 + $0x48] sm:$0xff]
    %v183 = vld [vmem:[#allocation8 + $0x50] sm:$0xff]
    %v184 = vld [vmem:[#allocation8 + $0x58] sm:$0xff]
    %v185 = vld [vmem:[#allocation8 + $0x60] sm:$0xff]
    %v186 = vld [vmem:[#allocation8 + $0x68] sm:$0xff]
    %v187 = vld [vmem:[#allocation8 + $0x70] sm:$0xff]
    %v188 = vld [vmem:[#allocation8 + $0x78] sm:$0xff]
    %v205 = vunpack.c.l.b16 %v173
    %v206 = vunpack.c.h.b16 %v173
    %v207 = vunpack.c.l.b16 %v174
    %v208 = vunpack.c.h.b16 %v174
    %v209 = vunpack.c.l.b16 %v175
    %v210 = vunpack.c.h.b16 %v175
    %v211 = vunpack.c.l.b16 %v176
    %v212 = vunpack.c.h.b16 %v176
    %v213 = vunpack.c.l.b16 %v177
    %v214 = vunpack.c.h.b16 %v177
    %v215 = vunpack.c.l.b16 %v178
    %v216 = vunpack.c.h.b16 %v178
    %v217 = vunpack.c.l.b16 %v179
    %v218 = vunpack.c.h.b16 %v179
    %v219 = vunpack.c.l.b16 %v180
    %v220 = vunpack.c.h.b16 %v180
    %v221 = vunpack.c.l.b16 %v181
    %v222 = vunpack.c.h.b16 %v181
    %v223 = vunpack.c.l.b16 %v182
    %v224 = vunpack.c.h.b16 %v182
    %v225 = vunpack.c.l.b16 %v183
    %v226 = vunpack.c.h.b16 %v183
    %v227 = vunpack.c.l.b16 %v184
    %v228 = vunpack.c.h.b16 %v184
    %v229 = vunpack.c.l.b16 %v185
    %v230 = vunpack.c.h.b16 %v185
    %v231 = vunpack.c.l.b16 %v186
    %v232 = vunpack.c.h.b16 %v186
    %v233 = vunpack.c.l.b16 %v187
    %v234 = vunpack.c.h.b16 %v187
    %v235 = vunpack.c.l.b16 %v188
    %v236 = vunpack.c.h.b16 %v188
    %v237 = vpack.c.b16 %v209, %v205
    %v238 = vpack.c.b16 %v210, %v206
    %v239 = vpack.c.b16 %v211, %v207
    %v240 = vpack.c.b16 %v212, %v208
    %v241 = vpack.c.b16 %v217, %v213
    %v242 = vpack.c.b16 %v218, %v214
    %v243 = vpack.c.b16 %v219, %v215
    %v244 = vpack.c.b16 %v220, %v216
    %v245 = vpack.c.b16 %v225, %v221
    %v246 = vpack.c.b16 %v226, %v222
    %v247 = vpack.c.b16 %v227, %v223
    %v248 = vpack.c.b16 %v228, %v224
    %v249 = vpack.c.b16 %v233, %v229
    %v250 = vpack.c.b16 %v234, %v230
    %v251 = vpack.c.b16 %v235, %v231
    %v252 = vpack.c.b16 %v236, %v232
    %vm269 = vcmask 523264
    %v271 = vsel %vm269, %v140, 0
    %273 = vmatpush.bf16.msra.mxu0 0
    %274 = vmatpush.bf16.msra.mxu0 0
    %275 = vmatpush.bf16.msra.mxu0 0
    %276 = vmatpush.bf16.msra.mxu0 0
    %277 = vmatpush.bf16.msra.mxu0 %v249
    %278 = vmatpush.bf16.msra.mxu0 %v245
    %279 = vmatpush.bf16.msra.mxu0 %v241
    %280 = vmatpush.bf16.msra.mxu0 %v237
    %281 = vmatmul.bf16.gmra.mxu0 %v271
    %v282 = vpop.f32.mrf.mxu0
    %v283 = vadd.f32 0.0, %v282
    %v284 = vpop.f32.mrf.mxu0
    %285 = vdwg.mxu0
    %286 = vmatpush.bf16.msra.mxu0 0
    %287 = vmatpush.bf16.msra.mxu0 0
    %288 = vmatpush.bf16.msra.mxu0 0
    %289 = vmatpush.bf16.msra.mxu0 0
    %290 = vmatpush.bf16.msra.mxu0 %v250
    %291 = vmatpush.bf16.msra.mxu0 %v246
    %292 = vmatpush.bf16.msra.mxu0 %v242
    %293 = vmatpush.bf16.msra.mxu0 %v238
    %294 = vmatmul.bf16.gmra.mxu0 %v271
    %v295 = vpop.f32.mrf.mxu0
    %v296 = vadd.f32 0.0, %v295
    %v297 = vpop.f32.mrf.mxu0
    %298 = vdwg.mxu0
    %299 = vmatpush.bf16.msra.mxu0 0
    %300 = vmatpush.bf16.msra.mxu0 0
    %301 = vmatpush.bf16.msra.mxu0 0
    %302 = vmatpush.bf16.msra.mxu0 0
    %303 = vmatpush.bf16.msra.mxu0 %v251
    %304 = vmatpush.bf16.msra.mxu0 %v247
    %305 = vmatpush.bf16.msra.mxu0 %v243
    %306 = vmatpush.bf16.msra.mxu0 %v239
    %307 = vmatmul.bf16.gmra.mxu0 %v271
    %v308 = vpop.f32.mrf.mxu0
    %v309 = vadd.f32 0.0, %v308
    %v310 = vpop.f32.mrf.mxu0
    %311 = vdwg.mxu0
    %312 = vmatpush.bf16.msra.mxu0 0
    %313 = vmatpush.bf16.msra.mxu0 0
    %314 = vmatpush.bf16.msra.mxu0 0
    %315 = vmatpush.bf16.msra.mxu0 0
    %316 = vmatpush.bf16.msra.mxu0 %v252
    %317 = vmatpush.bf16.msra.mxu0 %v248
    %318 = vmatpush.bf16.msra.mxu0 %v244
    %319 = vmatpush.bf16.msra.mxu0 %v240
    %320 = vmatmul.bf16.gmra.mxu0 %v271
    %v321 = vpop.f32.mrf.mxu0
    %v322 = vadd.f32 0.0, %v321
    %v323 = vpop.f32.mrf.mxu0
    %324 = vdwg.mxu0
    %v357 = vunpack.c.l.b16 %v141
    %v358 = vunpack.c.h.b16 %v141
    %v359 = vunpack.c.l.b16 %v142
    %v360 = vunpack.c.h.b16 %v142
    %v361 = vunpack.c.l.b16 %v143
    %v362 = vunpack.c.h.b16 %v143
    %v363 = vunpack.c.l.b16 %v144
    %v364 = vunpack.c.h.b16 %v144
    %v365 = vunpack.c.l.b16 %v145
    %v366 = vunpack.c.h.b16 %v145
    %v367 = vunpack.c.l.b16 %v146
    %v368 = vunpack.c.h.b16 %v146
    %v369 = vunpack.c.l.b16 %v147
    %v370 = vunpack.c.h.b16 %v147
    %v371 = vunpack.c.l.b16 %v148
    %v372 = vunpack.c.h.b16 %v148
    %v373 = vunpack.c.l.b16 %v149
    %v374 = vunpack.c.h.b16 %v149
    %v375 = vunpack.c.l.b16 %v150
    %v376 = vunpack.c.h.b16 %v150
    %v377 = vunpack.c.l.b16 %v151
    %v378 = vunpack.c.h.b16 %v151
    %v379 = vunpack.c.l.b16 %v152
    %v380 = vunpack.c.h.b16 %v152
    %v381 = vunpack.c.l.b16 %v153
    %v382 = vunpack.c.h.b16 %v153
    %v383 = vunpack.c.l.b16 %v154
    %v384 = vunpack.c.h.b16 %v154
    %v385 = vunpack.c.l.b16 %v155
    %v386 = vunpack.c.h.b16 %v155
    %v387 = vunpack.c.l.b16 %v156
    %v388 = vunpack.c.h.b16 %v156
    %v389 = vunpack.c.l.b16 %v157
    %v390 = vunpack.c.h.b16 %v157
    %v391 = vunpack.c.l.b16 %v158
    %v392 = vunpack.c.h.b16 %v158
    %v393 = vunpack.c.l.b16 %v159
    %v394 = vunpack.c.h.b16 %v159
    %v395 = vunpack.c.l.b16 %v160
    %v396 = vunpack.c.h.b16 %v160
    %v397 = vunpack.c.l.b16 %v161
    %v398 = vunpack.c.h.b16 %v161
    %v399 = vunpack.c.l.b16 %v162
    %v400 = vunpack.c.h.b16 %v162
    %v401 = vunpack.c.l.b16 %v163
    %v402 = vunpack.c.h.b16 %v163
    %v403 = vunpack.c.l.b16 %v164
    %v404 = vunpack.c.h.b16 %v164
    %v405 = vunpack.c.l.b16 %v165
    %v406 = vunpack.c.h.b16 %v165
    %v407 = vunpack.c.l.b16 %v166
    %v408 = vunpack.c.h.b16 %v166
    %v409 = vunpack.c.l.b16 %v167
    %v410 = vunpack.c.h.b16 %v167
    %v411 = vunpack.c.l.b16 %v168
    %v412 = vunpack.c.h.b16 %v168
    %v413 = vunpack.c.l.b16 %v169
    %v414 = vunpack.c.h.b16 %v169
    %v415 = vunpack.c.l.b16 %v170
    %v416 = vunpack.c.h.b16 %v170
    %v417 = vunpack.c.l.b16 %v171
    %v418 = vunpack.c.h.b16 %v171
    %v419 = vunpack.c.l.b16 %v172
    %v420 = vunpack.c.h.b16 %v172
    %v421 = vpack.c.b16 %v361, %v357
    %v422 = vpack.c.b16 %v362, %v358
    %v423 = vpack.c.b16 %v363, %v359
    %v424 = vpack.c.b16 %v364, %v360
    %v425 = vpack.c.b16 %v369, %v365
    %v426 = vpack.c.b16 %v370, %v366
    %v427 = vpack.c.b16 %v371, %v367
    %v428 = vpack.c.b16 %v372, %v368
    %v429 = vpack.c.b16 %v377, %v373
    %v430 = vpack.c.b16 %v378, %v374
    %v431 = vpack.c.b16 %v379, %v375
    %v432 = vpack.c.b16 %v380, %v376
    %v433 = vpack.c.b16 %v385, %v381
    %v434 = vpack.c.b16 %v386, %v382
    %v435 = vpack.c.b16 %v387, %v383
    %v436 = vpack.c.b16 %v388, %v384
    %v437 = vpack.c.b16 %v393, %v389
    %v438 = vpack.c.b16 %v394, %v390
    %v439 = vpack.c.b16 %v395, %v391
    %v440 = vpack.c.b16 %v396, %v392
    %v441 = vpack.c.b16 %v401, %v397
    %v442 = vpack.c.b16 %v402, %v398
    %v443 = vpack.c.b16 %v403, %v399
    %v444 = vpack.c.b16 %v404, %v400
    %v445 = vpack.c.b16 %v409, %v405
    %v446 = vpack.c.b16 %v410, %v406
    %v447 = vpack.c.b16 %v411, %v407
    %v448 = vpack.c.b16 %v412, %v408
    %v449 = vpack.c.b16 %v417, %v413
    %v450 = vpack.c.b16 %v418, %v414
    %v451 = vpack.c.b16 %v419, %v415
    %v452 = vpack.c.b16 %v420, %v416
    %485 = vmatpush.bf16.msra.mxu0 %v449
    %486 = vmatpush.bf16.msra.mxu0 %v445
    %487 = vmatpush.bf16.msra.mxu0 %v441
    %488 = vmatpush.bf16.msra.mxu0 %v437
    %489 = vmatpush.bf16.msra.mxu0 %v433
    %490 = vmatpush.bf16.msra.mxu0 %v429
    %491 = vmatpush.bf16.msra.mxu0 %v425
    %492 = vmatpush.bf16.msra.mxu0 %v421
    %493 = vmatmul.bf16.gmra.mxu0 %v138
    %v494 = vpop.f32.mrf.mxu0
    %v495 = vadd.f32 %v283, %v494
    %v496 = vpop.f32.mrf.mxu0
    %497 = vdwg.mxu0
    %498 = vmatpush.bf16.msra.mxu0 %v450
    %499 = vmatpush.bf16.msra.mxu0 %v446
    %500 = vmatpush.bf16.msra.mxu0 %v442
    %501 = vmatpush.bf16.msra.mxu0 %v438
    %502 = vmatpush.bf16.msra.mxu0 %v434
    %503 = vmatpush.bf16.msra.mxu0 %v430
    %504 = vmatpush.bf16.msra.mxu0 %v426
    %505 = vmatpush.bf16.msra.mxu0 %v422
    %506 = vmatmul.bf16.gmra.mxu0 %v138
    %v507 = vpop.f32.mrf.mxu0
    %v508 = vadd.f32 %v296, %v507
    %v509 = vpop.f32.mrf.mxu0
    %510 = vdwg.mxu0
    %511 = vmatpush.bf16.msra.mxu0 %v451
    %512 = vmatpush.bf16.msra.mxu0 %v447
    %513 = vmatpush.bf16.msra.mxu0 %v443
    %514 = vmatpush.bf16.msra.mxu0 %v439
    %515 = vmatpush.bf16.msra.mxu0 %v435
    %516 = vmatpush.bf16.msra.mxu0 %v431
    %517 = vmatpush.bf16.msra.mxu0 %v427
    %518 = vmatpush.bf16.msra.mxu0 %v423
    %519 = vmatmul.bf16.gmra.mxu0 %v138
    %v520 = vpop.f32.mrf.mxu0
    %v521 = vadd.f32 %v309, %v520
    %v522 = vpop.f32.mrf.mxu0
    %523 = vdwg.mxu0
    %524 = vmatpush.bf16.msra.mxu0 %v452
    %525 = vmatpush.bf16.msra.mxu0 %v448
    %526 = vmatpush.bf16.msra.mxu0 %v444
    %527 = vmatpush.bf16.msra.mxu0 %v440
    %528 = vmatpush.bf16.msra.mxu0 %v436
    %529 = vmatpush.bf16.msra.mxu0 %v432
    %530 = vmatpush.bf16.msra.mxu0 %v428
    %531 = vmatpush.bf16.msra.mxu0 %v424
    %532 = vmatmul.bf16.gmra.mxu0 %v138
    %v533 = vpop.f32.mrf.mxu0
    %v534 = vadd.f32 %v322, %v533
    %v535 = vpop.f32.mrf.mxu0
    %536 = vdwg.mxu0
    %v537 = vld [vmem:[#allocation10] sm:$0xf]
    %v539 = vperm.slane %v537, 0
    %v540 = vperm.slane %v537, 1
    %v541 = vperm.slane %v537, 2
    %v542 = vperm.slane %v537, 3
    %v547 = vadd.f32 %v495, %v539
    %v548 = vadd.f32 %v508, %v540
    %v549 = vadd.f32 %v521, %v541
    %v550 = vadd.f32 %v534, %v542
    %v551 = vmax.f32 %v547, 0.0
    %v552 = vmax.f32 %v548, 0.0
    %v553 = vmax.f32 %v549, 0.0
    %v554 = vmax.f32 %v550, 0.0
    %v555 = vpack.c.bf16 %v551, %v551
    %v556 = vpack.c.bf16 %v552, %v552
    %v557 = vpack.c.bf16 %v553, %v553
    %v558 = vpack.c.bf16 %v554, %v554
    %v559 = vld [vmem:[#allocation11] sm:$0xff]
    %v560 = vld [vmem:[#allocation11 + $0x8] sm:$0xff]
    %v561 = vld [vmem:[#allocation11 + $0x10] sm:$0xff]
    %v562 = vld [vmem:[#allocation11 + $0x18] sm:$0xff]
    %v563 = vld [vmem:[#allocation11 + $0x20] sm:$0xff]
    %v564 = vld [vmem:[#allocation11 + $0x28] sm:$0xff]
    %v565 = vld [vmem:[#allocation11 + $0x30] sm:$0xff]
    %v566 = vld [vmem:[#allocation11 + $0x38] sm:$0xff]
    %v567 = vld [vmem:[#allocation11 + $0x40] sm:$0xff]
    %v568 = vld [vmem:[#allocation11 + $0x48] sm:$0xff]
    %v569 = vld [vmem:[#allocation11 + $0x50] sm:$0xff]
    %v570 = vld [vmem:[#allocation11 + $0x58] sm:$0xff]
    %v571 = vld [vmem:[#allocation11 + $0x60] sm:$0xff]
    %v572 = vld [vmem:[#allocation11 + $0x68] sm:$0xff]
    %v573 = vld [vmem:[#allocation11 + $0x70] sm:$0xff]
    %v574 = vld [vmem:[#allocation11 + $0x78] sm:$0xff]
    %v575 = vld [vmem:[#allocation11 + $0x80] sm:$0xff]
    %v576 = vld [vmem:[#allocation11 + $0x88] sm:$0xff]
    %v577 = vld [vmem:[#allocation11 + $0x90] sm:$0xff]
    %v578 = vld [vmem:[#allocation11 + $0x98] sm:$0xff]
    %v579 = vld [vmem:[#allocation11 + $0xa0] sm:$0xff]
    %v580 = vld [vmem:[#allocation11 + $0xa8] sm:$0xff]
    %v581 = vld [vmem:[#allocation11 + $0xb0] sm:$0xff]
    %v582 = vld [vmem:[#allocation11 + $0xb8] sm:$0xff]
    %v583 = vld [vmem:[#allocation11 + $0xc0] sm:$0xff]
    %v584 = vld [vmem:[#allocation11 + $0xc8] sm:$0xff]
    %v585 = vld [vmem:[#allocation11 + $0xd0] sm:$0xff]
    %v586 = vld [vmem:[#allocation11 + $0xd8] sm:$0xff]
    %v587 = vld [vmem:[#allocation11 + $0xe0] sm:$0xff]
    %v588 = vld [vmem:[#allocation11 + $0xe8] sm:$0xff]
    %v589 = vld [vmem:[#allocation11 + $0xf0] sm:$0xff]
    %v590 = vld [vmem:[#allocation11 + $0xf8] sm:$0xff]
    %v591 = vld [vmem:[#allocation11 + $0x100] sm:$0xff]
    %v592 = vld [vmem:[#allocation11 + $0x108] sm:$0xff]
    %v593 = vld [vmem:[#allocation11 + $0x110] sm:$0xff]
    %v594 = vld [vmem:[#allocation11 + $0x118] sm:$0xff]
    %v595 = vld [vmem:[#allocation11 + $0x120] sm:$0xff]
    %v596 = vld [vmem:[#allocation11 + $0x128] sm:$0xff]
    %v597 = vld [vmem:[#allocation11 + $0x130] sm:$0xff]
    %v598 = vld [vmem:[#allocation11 + $0x138] sm:$0xff]
    %v599 = vld [vmem:[#allocation11 + $0x140] sm:$0xff]
    %v600 = vld [vmem:[#allocation11 + $0x148] sm:$0xff]
    %v601 = vld [vmem:[#allocation11 + $0x150] sm:$0xff]
    %v602 = vld [vmem:[#allocation11 + $0x158] sm:$0xff]
    %v603 = vld [vmem:[#allocation11 + $0x160] sm:$0xff]
    %v604 = vld [vmem:[#allocation11 + $0x168] sm:$0xff]
    %v605 = vld [vmem:[#allocation11 + $0x170] sm:$0xff]
    %v606 = vld [vmem:[#allocation11 + $0x178] sm:$0xff]
    %v607 = vld [vmem:[#allocation11 + $0x180] sm:$0xff]
    %v608 = vld [vmem:[#allocation11 + $0x188] sm:$0xff]
    %v609 = vld [vmem:[#allocation11 + $0x190] sm:$0xff]
    %v610 = vld [vmem:[#allocation11 + $0x198] sm:$0xff]
    %v611 = vld [vmem:[#allocation11 + $0x1a0] sm:$0xff]
    %v612 = vld [vmem:[#allocation11 + $0x1a8] sm:$0xff]
    %v613 = vld [vmem:[#allocation11 + $0x1b0] sm:$0xff]
    %v614 = vld [vmem:[#allocation11 + $0x1b8] sm:$0xff]
    %v615 = vld [vmem:[#allocation11 + $0x1c0] sm:$0xff]
    %v616 = vld [vmem:[#allocation11 + $0x1c8] sm:$0xff]
    %v617 = vld [vmem:[#allocation11 + $0x1d0] sm:$0xff]
    %v618 = vld [vmem:[#allocation11 + $0x1d8] sm:$0xff]
    %v619 = vld [vmem:[#allocation11 + $0x1e0] sm:$0xff]
    %v620 = vld [vmem:[#allocation11 + $0x1e8] sm:$0xff]
    %v621 = vld [vmem:[#allocation11 + $0x1f0] sm:$0xff]
    %v622 = vld [vmem:[#allocation11 + $0x1f8] sm:$0xff]
    %v623 = vld [vmem:[%s6] sm:$0x3]
    %v625 = vperm.slane %v623, 0
    %v626 = vperm.slane %v623, 1
    %v693 = vunpack.c.l.b16 %v559
    %v694 = vunpack.c.h.b16 %v559
    %v695 = vunpack.c.l.b16 %v560
    %v696 = vunpack.c.h.b16 %v560
    %v697 = vunpack.c.l.b16 %v561
    %v698 = vunpack.c.h.b16 %v561
    %v699 = vunpack.c.l.b16 %v562
    %v700 = vunpack.c.h.b16 %v562
    %v701 = vunpack.c.l.b16 %v563
    %v702 = vunpack.c.h.b16 %v563
    %v703 = vunpack.c.l.b16 %v564
    %v704 = vunpack.c.h.b16 %v564
    %v705 = vunpack.c.l.b16 %v565
    %v706 = vunpack.c.h.b16 %v565
    %v707 = vunpack.c.l.b16 %v566
    %v708 = vunpack.c.h.b16 %v566
    %v709 = vunpack.c.l.b16 %v567
    %v710 = vunpack.c.h.b16 %v567
    %v711 = vunpack.c.l.b16 %v568
    %v712 = vunpack.c.h.b16 %v568
    %v713 = vunpack.c.l.b16 %v569
    %v714 = vunpack.c.h.b16 %v569
    %v715 = vunpack.c.l.b16 %v570
    %v716 = vunpack.c.h.b16 %v570
    %v717 = vunpack.c.l.b16 %v571
    %v718 = vunpack.c.h.b16 %v571
    %v719 = vunpack.c.l.b16 %v572
    %v720 = vunpack.c.h.b16 %v572
    %v721 = vunpack.c.l.b16 %v573
    %v722 = vunpack.c.h.b16 %v573
    %v723 = vunpack.c.l.b16 %v574
    %v724 = vunpack.c.h.b16 %v574
    %v725 = vunpack.c.l.b16 %v575
    %v726 = vunpack.c.h.b16 %v575
    %v727 = vunpack.c.l.b16 %v576
    %v728 = vunpack.c.h.b16 %v576
    %v729 = vunpack.c.l.b16 %v577
    %v730 = vunpack.c.h.b16 %v577
    %v731 = vunpack.c.l.b16 %v578
    %v732 = vunpack.c.h.b16 %v578
    %v733 = vunpack.c.l.b16 %v579
    %v734 = vunpack.c.h.b16 %v579
    %v735 = vunpack.c.l.b16 %v580
    %v736 = vunpack.c.h.b16 %v580
    %v737 = vunpack.c.l.b16 %v581
    %v738 = vunpack.c.h.b16 %v581
    %v739 = vunpack.c.l.b16 %v582
    %v740 = vunpack.c.h.b16 %v582
    %v741 = vunpack.c.l.b16 %v583
    %v742 = vunpack.c.h.b16 %v583
    %v743 = vunpack.c.l.b16 %v584
    %v744 = vunpack.c.h.b16 %v584
    %v745 = vunpack.c.l.b16 %v585
    %v746 = vunpack.c.h.b16 %v585
    %v747 = vunpack.c.l.b16 %v586
    %v748 = vunpack.c.h.b16 %v586
    %v749 = vunpack.c.l.b16 %v587
    %v750 = vunpack.c.h.b16 %v587
    %v751 = vunpack.c.l.b16 %v588
    %v752 = vunpack.c.h.b16 %v588
    %v753 = vunpack.c.l.b16 %v589
    %v754 = vunpack.c.h.b16 %v589
    %v755 = vunpack.c.l.b16 %v590
    %v756 = vunpack.c.h.b16 %v590
    %v757 = vunpack.c.l.b16 %v591
    %v758 = vunpack.c.h.b16 %v591
    %v759 = vunpack.c.l.b16 %v592
    %v760 = vunpack.c.h.b16 %v592
    %v761 = vunpack.c.l.b16 %v593
    %v762 = vunpack.c.h.b16 %v593
    %v763 = vunpack.c.l.b16 %v594
    %v764 = vunpack.c.h.b16 %v594
    %v765 = vunpack.c.l.b16 %v595
    %v766 = vunpack.c.h.b16 %v595
    %v767 = vunpack.c.l.b16 %v596
    %v768 = vunpack.c.h.b16 %v596
    %v769 = vunpack.c.l.b16 %v597
    %v770 = vunpack.c.h.b16 %v597
    %v771 = vunpack.c.l.b16 %v598
    %v772 = vunpack.c.h.b16 %v598
    %v773 = vunpack.c.l.b16 %v599
    %v774 = vunpack.c.h.b16 %v599
    %v775 = vunpack.c.l.b16 %v600
    %v776 = vunpack.c.h.b16 %v600
    %v777 = vunpack.c.l.b16 %v601
    %v778 = vunpack.c.h.b16 %v601
    %v779 = vunpack.c.l.b16 %v602
    %v780 = vunpack.c.h.b16 %v602
    %v781 = vunpack.c.l.b16 %v603
    %v782 = vunpack.c.h.b16 %v603
    %v783 = vunpack.c.l.b16 %v604
    %v784 = vunpack.c.h.b16 %v604
    %v785 = vunpack.c.l.b16 %v605
    %v786 = vunpack.c.h.b16 %v605
    %v787 = vunpack.c.l.b16 %v606
    %v788 = vunpack.c.h.b16 %v606
    %v789 = vunpack.c.l.b16 %v607
    %v790 = vunpack.c.h.b16 %v607
    %v791 = vunpack.c.l.b16 %v608
    %v792 = vunpack.c.h.b16 %v608
    %v793 = vunpack.c.l.b16 %v609
    %v794 = vunpack.c.h.b16 %v609
    %v795 = vunpack.c.l.b16 %v610
    %v796 = vunpack.c.h.b16 %v610
    %v797 = vunpack.c.l.b16 %v611
    %v798 = vunpack.c.h.b16 %v611
    %v799 = vunpack.c.l.b16 %v612
    %v800 = vunpack.c.h.b16 %v612
    %v801 = vunpack.c.l.b16 %v613
    %v802 = vunpack.c.h.b16 %v613
    %v803 = vunpack.c.l.b16 %v614
    %v804 = vunpack.c.h.b16 %v614
    %v805 = vunpack.c.l.b16 %v615
    %v806 = vunpack.c.h.b16 %v615
    %v807 = vunpack.c.l.b16 %v616
    %v808 = vunpack.c.h.b16 %v616
    %v809 = vunpack.c.l.b16 %v617
    %v810 = vunpack.c.h.b16 %v617
    %v811 = vunpack.c.l.b16 %v618
    %v812 = vunpack.c.h.b16 %v618
    %v813 = vunpack.c.l.b16 %v619
    %v814 = vunpack.c.h.b16 %v619
    %v815 = vunpack.c.l.b16 %v620
    %v816 = vunpack.c.h.b16 %v620
    %v817 = vunpack.c.l.b16 %v621
    %v818 = vunpack.c.h.b16 %v621
    %v819 = vunpack.c.l.b16 %v622
    %v820 = vunpack.c.h.b16 %v622
    %v821 = vpack.c.b16 %v695, %v693
    %v822 = vpack.c.b16 %v696, %v694
    %v823 = vpack.c.b16 %v699, %v697
    %v824 = vpack.c.b16 %v700, %v698
    %v825 = vpack.c.b16 %v703, %v701
    %v826 = vpack.c.b16 %v704, %v702
    %v827 = vpack.c.b16 %v707, %v705
    %v828 = vpack.c.b16 %v708, %v706
    %v829 = vpack.c.b16 %v711, %v709
    %v830 = vpack.c.b16 %v712, %v710
    %v831 = vpack.c.b16 %v715, %v713
    %v832 = vpack.c.b16 %v716, %v714
    %v833 = vpack.c.b16 %v719, %v717
    %v834 = vpack.c.b16 %v720, %v718
    %v835 = vpack.c.b16 %v723, %v721
    %v836 = vpack.c.b16 %v724, %v722
    %v837 = vpack.c.b16 %v727, %v725
    %v838 = vpack.c.b16 %v728, %v726
    %v839 = vpack.c.b16 %v731, %v729
    %v840 = vpack.c.b16 %v732, %v730
    %v841 = vpack.c.b16 %v735, %v733
    %v842 = vpack.c.b16 %v736, %v734
    %v843 = vpack.c.b16 %v739, %v737
    %v844 = vpack.c.b16 %v740, %v738
    %v845 = vpack.c.b16 %v743, %v741
    %v846 = vpack.c.b16 %v744, %v742
    %v847 = vpack.c.b16 %v747, %v745
    %v848 = vpack.c.b16 %v748, %v746
    %v849 = vpack.c.b16 %v751, %v749
    %v850 = vpack.c.b16 %v752, %v750
    %v851 = vpack.c.b16 %v755, %v753
    %v852 = vpack.c.b16 %v756, %v754
    %v853 = vpack.c.b16 %v759, %v757
    %v854 = vpack.c.b16 %v760, %v758
    %v855 = vpack.c.b16 %v763, %v761
    %v856 = vpack.c.b16 %v764, %v762
    %v857 = vpack.c.b16 %v767, %v765
    %v858 = vpack.c.b16 %v768, %v766
    %v859 = vpack.c.b16 %v771, %v769
    %v860 = vpack.c.b16 %v772, %v770
    %v861 = vpack.c.b16 %v775, %v773
    %v862 = vpack.c.b16 %v776, %v774
    %v863 = vpack.c.b16 %v779, %v777
    %v864 = vpack.c.b16 %v780, %v778
    %v865 = vpack.c.b16 %v783, %v781
    %v866 = vpack.c.b16 %v784, %v782
    %v867 = vpack.c.b16 %v787, %v785
    %v868 = vpack.c.b16 %v788, %v786
    %v869 = vpack.c.b16 %v791, %v789
    %v870 = vpack.c.b16 %v792, %v790
    %v871 = vpack.c.b16 %v795, %v793
    %v872 = vpack.c.b16 %v796, %v794
    %v873 = vpack.c.b16 %v799, %v797
    %v874 = vpack.c.b16 %v800, %v798
    %v875 = vpack.c.b16 %v803, %v801
    %v876 = vpack.c.b16 %v804, %v802
    %v877 = vpack.c.b16 %v807, %v805
    %v878 = vpack.c.b16 %v808, %v806
    %v879 = vpack.c.b16 %v811, %v809
    %v880 = vpack.c.b16 %v812, %v810
    %v881 = vpack.c.b16 %v815, %v813
    %v882 = vpack.c.b16 %v816, %v814
    %v883 = vpack.c.b16 %v819, %v817
    %v884 = vpack.c.b16 %v820, %v818
    %949 = vmatpush.bf16.msra.mxu0 %v835
    %950 = vmatpush.bf16.msra.mxu0 %v833
    %951 = vmatpush.bf16.msra.mxu0 %v831
    %952 = vmatpush.bf16.msra.mxu0 %v829
    %953 = vmatpush.bf16.msra.mxu0 %v827
    %954 = vmatpush.bf16.msra.mxu0 %v825
    %955 = vmatpush.bf16.msra.mxu0 %v823
    %956 = vmatpush.bf16.msra.mxu0 %v821
    %957 = vmatmul.bf16.gmra.mxu0 %v555
    %v958 = vpop.f32.mrf.mxu0
    %v959 = vadd.f32 %v625, %v958
    %v960 = vpop.f32.mrf.mxu0
    %961 = vdwg.mxu0
    %962 = vmatpush.bf16.msra.mxu0 %v851
    %963 = vmatpush.bf16.msra.mxu0 %v849
    %964 = vmatpush.bf16.msra.mxu0 %v847
    %965 = vmatpush.bf16.msra.mxu0 %v845
    %966 = vmatpush.bf16.msra.mxu0 %v843
    %967 = vmatpush.bf16.msra.mxu0 %v841
    %968 = vmatpush.bf16.msra.mxu0 %v839
    %969 = vmatpush.bf16.msra.mxu0 %v837
    %970 = vmatmul.bf16.gmra.mxu0 %v556
    %v971 = vpop.f32.mrf.mxu0
    %v972 = vadd.f32 %v959, %v971
    %v973 = vpop.f32.mrf.mxu0
    %974 = vdwg.mxu0
    %975 = vmatpush.bf16.msra.mxu0 %v867
    %976 = vmatpush.bf16.msra.mxu0 %v865
    %977 = vmatpush.bf16.msra.mxu0 %v863
    %978 = vmatpush.bf16.msra.mxu0 %v861
    %979 = vmatpush.bf16.msra.mxu0 %v859
    %980 = vmatpush.bf16.msra.mxu0 %v857
    %981 = vmatpush.bf16.msra.mxu0 %v855
    %982 = vmatpush.bf16.msra.mxu0 %v853
    %983 = vmatmul.bf16.gmra.mxu0 %v557
    %v984 = vpop.f32.mrf.mxu0
    %v985 = vadd.f32 %v972, %v984
    %v986 = vpop.f32.mrf.mxu0
    %987 = vdwg.mxu0
    %988 = vmatpush.bf16.msra.mxu0 %v883
    %989 = vmatpush.bf16.msra.mxu0 %v881
    %990 = vmatpush.bf16.msra.mxu0 %v879
    %991 = vmatpush.bf16.msra.mxu0 %v877
    %992 = vmatpush.bf16.msra.mxu0 %v875
    %993 = vmatpush.bf16.msra.mxu0 %v873
    %994 = vmatpush.bf16.msra.mxu0 %v871
    %995 = vmatpush.bf16.msra.mxu0 %v869
    %996 = vmatmul.bf16.gmra.mxu0 %v558
    %v997 = vpop.f32.mrf.mxu0
    %v998 = vadd.f32 %v985, %v997
    %v999 = vpop.f32.mrf.mxu0
    %1000 = vdwg.mxu0
    %1001 = vmatpush.bf16.msra.mxu0 %v836
    %1002 = vmatpush.bf16.msra.mxu0 %v834
    %1003 = vmatpush.bf16.msra.mxu0 %v832
    %1004 = vmatpush.bf16.msra.mxu0 %v830
    %1005 = vmatpush.bf16.msra.mxu0 %v828
    %1006 = vmatpush.bf16.msra.mxu0 %v826
    %1007 = vmatpush.bf16.msra.mxu0 %v824
    %1008 = vmatpush.bf16.msra.mxu0 %v822
    %1009 = vmatmul.bf16.gmra.mxu0 %v555
    %v1010 = vpop.f32.mrf.mxu0
    %v1011 = vadd.f32 %v626, %v1010
    %v1012 = vpop.f32.mrf.mxu0
    %1013 = vdwg.mxu0
    %1014 = vmatpush.bf16.msra.mxu0 %v852
    %1015 = vmatpush.bf16.msra.mxu0 %v850
    %1016 = vmatpush.bf16.msra.mxu0 %v848
    %1017 = vmatpush.bf16.msra.mxu0 %v846
    %1018 = vmatpush.bf16.msra.mxu0 %v844
    %1019 = vmatpush.bf16.msra.mxu0 %v842
    %1020 = vmatpush.bf16.msra.mxu0 %v840
    %1021 = vmatpush.bf16.msra.mxu0 %v838
    %1022 = vmatmul.bf16.gmra.mxu0 %v556
    %v1023 = vpop.f32.mrf.mxu0
    %v1024 = vadd.f32 %v1011, %v1023
    %v1025 = vpop.f32.mrf.mxu0
    %1026 = vdwg.mxu0
    %1027 = vmatpush.bf16.msra.mxu0 %v868
    %1028 = vmatpush.bf16.msra.mxu0 %v866
    %1029 = vmatpush.bf16.msra.mxu0 %v864
    %1030 = vmatpush.bf16.msra.mxu0 %v862
    %1031 = vmatpush.bf16.msra.mxu0 %v860
    %1032 = vmatpush.bf16.msra.mxu0 %v858
    %1033 = vmatpush.bf16.msra.mxu0 %v856
    %1034 = vmatpush.bf16.msra.mxu0 %v854
    %1035 = vmatmul.bf16.gmra.mxu0 %v557
    %v1036 = vpop.f32.mrf.mxu0
    %v1037 = vadd.f32 %v1024, %v1036
    %v1038 = vpop.f32.mrf.mxu0
    %1039 = vdwg.mxu0
    %1040 = vmatpush.bf16.msra.mxu0 %v884
    %1041 = vmatpush.bf16.msra.mxu0 %v882
    %1042 = vmatpush.bf16.msra.mxu0 %v880
    %1043 = vmatpush.bf16.msra.mxu0 %v878
    %1044 = vmatpush.bf16.msra.mxu0 %v876
    %1045 = vmatpush.bf16.msra.mxu0 %v874
    %1046 = vmatpush.bf16.msra.mxu0 %v872
    %1047 = vmatpush.bf16.msra.mxu0 %v870
    %1048 = vmatmul.bf16.gmra.mxu0 %v558
    %v1049 = vpop.f32.mrf.mxu0
    %v1050 = vadd.f32 %v1037, %v1049
    %v1051 = vpop.f32.mrf.mxu0
    %1052 = vdwg.mxu0
    %v1053 = vmax.f32 %v998, 0.0
    %v1054 = vmax.f32 %v1050, 0.0
    %v1055 = vpack.c.bf16 %v1053, %v1053
    %v1056 = vpack.c.bf16 %v1054, %v1054
    %v1057 = vld [vmem:[#allocation13] sm:$0xff]
    %v1058 = vld [vmem:[#allocation13 + $0x8] sm:$0xff]
    %v1059 = vld [vmem:[#allocation13 + $0x10] sm:$0xff]
    %v1060 = vld [vmem:[#allocation13 + $0x18] sm:$0xff]
    %v1061 = vld [vmem:[#allocation13 + $0x20] sm:$0xff]
    %v1062 = vld [vmem:[#allocation13 + $0x28] sm:$0xff]
    %v1063 = vld [vmem:[#allocation13 + $0x30] sm:$0xff]
    %v1064 = vld [vmem:[#allocation13 + $0x38] sm:$0xff]
    %v1065 = vld [vmem:[#allocation13 + $0x40] sm:$0xff]
    %v1066 = vld [vmem:[#allocation13 + $0x48] sm:$0xff]
    %v1067 = vld [vmem:[#allocation13 + $0x50] sm:$0xff]
    %v1068 = vld [vmem:[#allocation13 + $0x58] sm:$0xff]
    %v1069 = vld [vmem:[#allocation13 + $0x60] sm:$0xff]
    %v1070 = vld [vmem:[#allocation13 + $0x68] sm:$0xff]
    %v1071 = vld [vmem:[#allocation13 + $0x70] sm:$0xff]
    %v1072 = vld [vmem:[#allocation13 + $0x78] sm:$0xff]
    %v1073 = vld [vmem:[#allocation13 + $0x80] sm:$0xff]
    %v1074 = vld [vmem:[#allocation13 + $0x88] sm:$0xff]
    %v1075 = vld [vmem:[#allocation13 + $0x90] sm:$0xff]
    %v1076 = vld [vmem:[#allocation13 + $0x98] sm:$0xff]
    %v1077 = vld [vmem:[#allocation13 + $0xa0] sm:$0xff]
    %v1078 = vld [vmem:[#allocation13 + $0xa8] sm:$0xff]
    %v1079 = vld [vmem:[#allocation13 + $0xb0] sm:$0xff]
    %v1080 = vld [vmem:[#allocation13 + $0xb8] sm:$0xff]
    %v1081 = vld [vmem:[#allocation13 + $0xc0] sm:$0xff]
    %v1082 = vld [vmem:[#allocation13 + $0xc8] sm:$0xff]
    %v1083 = vld [vmem:[#allocation13 + $0xd0] sm:$0xff]
    %v1084 = vld [vmem:[#allocation13 + $0xd8] sm:$0xff]
    %v1085 = vld [vmem:[#allocation13 + $0xe0] sm:$0xff]
    %v1086 = vld [vmem:[#allocation13 + $0xe8] sm:$0xff]
    %v1087 = vld [vmem:[#allocation13 + $0xf0] sm:$0xff]
    %v1088 = vld [vmem:[#allocation13 + $0xf8] sm:$0xff]
    %v1089 = vld [vmem:[%s8] sm:$0x3]
    %v1091 = vperm.slane %v1089, 0
    %v1092 = vperm.slane %v1089, 1
    %v1127 = vunpack.c.l.b16 %v1057
    %v1128 = vunpack.c.h.b16 %v1057
    %v1129 = vunpack.c.l.b16 %v1058
    %v1130 = vunpack.c.h.b16 %v1058
    %v1131 = vunpack.c.l.b16 %v1059
    %v1132 = vunpack.c.h.b16 %v1059
    %v1133 = vunpack.c.l.b16 %v1060
    %v1134 = vunpack.c.h.b16 %v1060
    %v1135 = vunpack.c.l.b16 %v1061
    %v1136 = vunpack.c.h.b16 %v1061
    %v1137 = vunpack.c.l.b16 %v1062
    %v1138 = vunpack.c.h.b16 %v1062
    %v1139 = vunpack.c.l.b16 %v1063
    %v1140 = vunpack.c.h.b16 %v1063
    %v1141 = vunpack.c.l.b16 %v1064
    %v1142 = vunpack.c.h.b16 %v1064
    %v1143 = vunpack.c.l.b16 %v1065
    %v1144 = vunpack.c.h.b16 %v1065
    %v1145 = vunpack.c.l.b16 %v1066
    %v1146 = vunpack.c.h.b16 %v1066
    %v1147 = vunpack.c.l.b16 %v1067
    %v1148 = vunpack.c.h.b16 %v1067
    %v1149 = vunpack.c.l.b16 %v1068
    %v1150 = vunpack.c.h.b16 %v1068
    %v1151 = vunpack.c.l.b16 %v1069
    %v1152 = vunpack.c.h.b16 %v1069
    %v1153 = vunpack.c.l.b16 %v1070
    %v1154 = vunpack.c.h.b16 %v1070
    %v1155 = vunpack.c.l.b16 %v1071
    %v1156 = vunpack.c.h.b16 %v1071
    %v1157 = vunpack.c.l.b16 %v1072
    %v1158 = vunpack.c.h.b16 %v1072
    %v1159 = vunpack.c.l.b16 %v1073
    %v1160 = vunpack.c.h.b16 %v1073
    %v1161 = vunpack.c.l.b16 %v1074
    %v1162 = vunpack.c.h.b16 %v1074
    %v1163 = vunpack.c.l.b16 %v1075
    %v1164 = vunpack.c.h.b16 %v1075
    %v1165 = vunpack.c.l.b16 %v1076
    %v1166 = vunpack.c.h.b16 %v1076
    %v1167 = vunpack.c.l.b16 %v1077
    %v1168 = vunpack.c.h.b16 %v1077
    %v1169 = vunpack.c.l.b16 %v1078
    %v1170 = vunpack.c.h.b16 %v1078
    %v1171 = vunpack.c.l.b16 %v1079
    %v1172 = vunpack.c.h.b16 %v1079
    %v1173 = vunpack.c.l.b16 %v1080
    %v1174 = vunpack.c.h.b16 %v1080
    %v1175 = vunpack.c.l.b16 %v1081
    %v1176 = vunpack.c.h.b16 %v1081
    %v1177 = vunpack.c.l.b16 %v1082
    %v1178 = vunpack.c.h.b16 %v1082
    %v1179 = vunpack.c.l.b16 %v1083
    %v1180 = vunpack.c.h.b16 %v1083
    %v1181 = vunpack.c.l.b16 %v1084
    %v1182 = vunpack.c.h.b16 %v1084
    %v1183 = vunpack.c.l.b16 %v1085
    %v1184 = vunpack.c.h.b16 %v1085
    %v1185 = vunpack.c.l.b16 %v1086
    %v1186 = vunpack.c.h.b16 %v1086
    %v1187 = vunpack.c.l.b16 %v1087
    %v1188 = vunpack.c.h.b16 %v1087
    %v1189 = vunpack.c.l.b16 %v1088
    %v1190 = vunpack.c.h.b16 %v1088
    %v1191 = vpack.c.b16 %v1129, %v1127
    %v1192 = vpack.c.b16 %v1130, %v1128
    %v1193 = vpack.c.b16 %v1133, %v1131
    %v1194 = vpack.c.b16 %v1134, %v1132
    %v1195 = vpack.c.b16 %v1137, %v1135
    %v1196 = vpack.c.b16 %v1138, %v1136
    %v1197 = vpack.c.b16 %v1141, %v1139
    %v1198 = vpack.c.b16 %v1142, %v1140
    %v1199 = vpack.c.b16 %v1145, %v1143
    %v1200 = vpack.c.b16 %v1146, %v1144
    %v1201 = vpack.c.b16 %v1149, %v1147
    %v1202 = vpack.c.b16 %v1150, %v1148
    %v1203 = vpack.c.b16 %v1153, %v1151
    %v1204 = vpack.c.b16 %v1154, %v1152
    %v1205 = vpack.c.b16 %v1157, %v1155
    %v1206 = vpack.c.b16 %v1158, %v1156
    %v1207 = vpack.c.b16 %v1161, %v1159
    %v1208 = vpack.c.b16 %v1162, %v1160
    %v1209 = vpack.c.b16 %v1165, %v1163
    %v1210 = vpack.c.b16 %v1166, %v1164
    %v1211 = vpack.c.b16 %v1169, %v1167
    %v1212 = vpack.c.b16 %v1170, %v1168
    %v1213 = vpack.c.b16 %v1173, %v1171
    %v1214 = vpack.c.b16 %v1174, %v1172
    %v1215 = vpack.c.b16 %v1177, %v1175
    %v1216 = vpack.c.b16 %v1178, %v1176
    %v1217 = vpack.c.b16 %v1181, %v1179
    %v1218 = vpack.c.b16 %v1182, %v1180
    %v1219 = vpack.c.b16 %v1185, %v1183
    %v1220 = vpack.c.b16 %v1186, %v1184
    %v1221 = vpack.c.b16 %v1189, %v1187
    %v1222 = vpack.c.b16 %v1190, %v1188
    %1255 = vmatpush.bf16.msra.mxu0 %v1205
    %1256 = vmatpush.bf16.msra.mxu0 %v1203
    %1257 = vmatpush.bf16.msra.mxu0 %v1201
    %1258 = vmatpush.bf16.msra.mxu0 %v1199
    %1259 = vmatpush.bf16.msra.mxu0 %v1197
    %1260 = vmatpush.bf16.msra.mxu0 %v1195
    %1261 = vmatpush.bf16.msra.mxu0 %v1193
    %1262 = vmatpush.bf16.msra.mxu0 %v1191
    %1263 = vmatmul.bf16.gmra.mxu0 %v1055
    %v1264 = vpop.f32.mrf.mxu0
    %v1265 = vadd.f32 %v1091, %v1264
    %v1266 = vpop.f32.mrf.mxu0
    %1267 = vdwg.mxu0
    %1268 = vmatpush.bf16.msra.mxu0 %v1221
    %1269 = vmatpush.bf16.msra.mxu0 %v1219
    %1270 = vmatpush.bf16.msra.mxu0 %v1217
    %1271 = vmatpush.bf16.msra.mxu0 %v1215
    %1272 = vmatpush.bf16.msra.mxu0 %v1213
    %1273 = vmatpush.bf16.msra.mxu0 %v1211
    %1274 = vmatpush.bf16.msra.mxu0 %v1209
    %1275 = vmatpush.bf16.msra.mxu0 %v1207
    %1276 = vmatmul.bf16.gmra.mxu0 %v1056
    %v1277 = vpop.f32.mrf.mxu0
    %v1278 = vadd.f32 %v1265, %v1277
    %v1279 = vpop.f32.mrf.mxu0
    %1280 = vdwg.mxu0
    %1281 = vmatpush.bf16.msra.mxu0 %v1206
    %1282 = vmatpush.bf16.msra.mxu0 %v1204
    %1283 = vmatpush.bf16.msra.mxu0 %v1202
    %1284 = vmatpush.bf16.msra.mxu0 %v1200
    %1285 = vmatpush.bf16.msra.mxu0 %v1198
    %1286 = vmatpush.bf16.msra.mxu0 %v1196
    %1287 = vmatpush.bf16.msra.mxu0 %v1194
    %1288 = vmatpush.bf16.msra.mxu0 %v1192
    %1289 = vmatmul.bf16.gmra.mxu0 %v1055
    %v1290 = vpop.f32.mrf.mxu0
    %v1291 = vadd.f32 %v1092, %v1290
    %v1292 = vpop.f32.mrf.mxu0
    %1293 = vdwg.mxu0
    %1294 = vmatpush.bf16.msra.mxu0 %v1222
    %1295 = vmatpush.bf16.msra.mxu0 %v1220
    %1296 = vmatpush.bf16.msra.mxu0 %v1218
    %1297 = vmatpush.bf16.msra.mxu0 %v1216
    %1298 = vmatpush.bf16.msra.mxu0 %v1214
    %1299 = vmatpush.bf16.msra.mxu0 %v1212
    %1300 = vmatpush.bf16.msra.mxu0 %v1210
    %1301 = vmatpush.bf16.msra.mxu0 %v1208
    %1302 = vmatmul.bf16.gmra.mxu0 %v1056
    %v1303 = vpop.f32.mrf.mxu0
    %v1304 = vadd.f32 %v1291, %v1303
    %v1305 = vpop.f32.mrf.mxu0
    %1306 = vdwg.mxu0
    %v1307 = vmul.f32 %v1278, %v1278
    %v1308 = vmul.f32 %v1304, %v1304
    %v1309 = vadd.f32 %v1307, %v1308
    %1310 = vadd.xlane.f32.xlu0 %v1309
    %v1311 = vpop.xlane.xlu0 %1310
    %v1312 = vmax.f32 %v1311, 1e-24
    %v1313 = vrsqrt.pop %v1312
    %v1314 = vmul.f32 %v1313, %v1312
    %v1315 = vmul.f32 %v1314, %v1313
    %v1316 = vmul.f32 0.5, %v1315
    %v1317 = vsub.f32 1.5, %v1316
    %v1318 = vmul.f32 %v1313, %v1317
    %vm1319 = vweird.f32 %v1312
    %vm1320 = vweird.f32 %v1313
    %vm1321 = vmor %vm1319, %vm1320
    %v1322 = vsel %vm1321, %v1313, %v1318
    %v1323 = vmul.f32 %v1278, %v1322
    %v1324 = vmul.f32 %v1304, %v1322
    %v1325 = vpack.c.bf16 %v1324, %v1323
    %1326 = vst [vmem:[#allocation14] sm:$0xff] %v1325
    // Predicated region
    $region66: #{tpu_custom_call.1} parent=1 // pred_check
      _
    $region67: #{tpu_custom_call.1} parent=1 // pred_check_branch
      %1328 = sbr.rel (0) target = $region69
    $region68: #{tpu_custom_call.1} parent=1 // pred_region
      %1330 = vsyncadd [#allocation4], 0
      %s1332 = sshll.u32 [#allocation14], 4
      %s1333 = int_to_ptr.vmem [resolvable:$true] %s1332
      %s1334 = sshll.u32 %s9, 4
      %s1335 = int_to_ptr.hbm [resolvable:$true] %s1334
      %1337 = dma.vmem_to_hbm [thread:$0]  %s1333, 128, %s1335, [#allocation4]
    $region69: #{tpu_custom_call.1} parent=1 // pred_fallthru
      _
    // Predicated region
    $region70: #{tpu_custom_call.1} parent=1 // pred_check
      _
    $region71: #{tpu_custom_call.1} parent=1 // pred_check_branch
      %1339 = sbr.rel (0) target = $region73
    $region72: #{tpu_custom_call.1} parent=1 // pred_region
      %1341 = dma.done [#allocation4], 128
    $region73: #{tpu_custom_call.1} parent=1 // pred_fallthru
      _
    %1342 = vsyncpa [#allocation3], 1
    %1343 = vsyncpa [#allocation6], 1
    %1344 = vsyncpa [#allocation9], 1
    %1345 = vsyncpa [#allocation12], 1
    %1346 = vsyncpa [#allocation4], 1

</llo_original>
